<compile_context>
chip_gen: v7x
topology: tpu7x:2x2x1
jax: 0.10.0
libtpu: 0.0.40
codegen_flags: <defaults>
</compile_context>

<pallas_src>
import functools

import jax
import jax.numpy as jnp
from jax.experimental import pallas as pl
from jax.experimental.pallas import tpu as pltpu

# Finite stand-in for -inf used to disable padded vocab columns:
# exp(x - m) underflows to exactly 0.0 in f32, and no inf-inf NaNs can appear.
_NEG_BIG = -1e30


def _round_up(a, b):
    return (a + b - 1) // b * b


def mlm_kernel(x_ref, w_ref, b_ref, o_ref, m_scr, l_scr, *, tv, num_v_tiles):
    # x_ref: (TM, H) bf16   w_ref: (H, TV) bf16   b_ref: (1, TV) f32
    # o_ref: (TM, V_pad) f32 (resident across the vocab loop)
    # m_scr / l_scr: (TM, 1) f32 running max / running sum-exp
    j = pl.program_id(1)

    @pl.when(j == 0)
    def _init():
        m_scr[...] = jnp.full_like(m_scr, _NEG_BIG)
        l_scr[...] = jnp.zeros_like(l_scr)

    # bf16 x bf16 -> f32 accumulation on the MXU; bias add in f32.
    logits = jnp.dot(x_ref[...], w_ref[...],
                     preferred_element_type=jnp.float32)
    logits = logits + b_ref[...]

    # Online (flash-style) running max / sum-exp across vocab tiles.
    m_prev = m_scr[...]
    m_new = jnp.maximum(m_prev, jnp.max(logits, axis=-1, keepdims=True))
    l_scr[...] = (jnp.exp(m_prev - m_new) * l_scr[...]
                  + jnp.sum(jnp.exp(logits - m_new), axis=-1, keepdims=True))
    m_scr[...] = m_new

    # Stash raw f32 logits for tiles 0..n-2 directly into the resident output
    # slab (static, 128-aligned lane-dense stores; only one branch runs).
    for k in range(num_v_tiles - 1):
        @pl.when(j == k)
        def _store(k=k):
            o_ref[:, k * tv:(k + 1) * tv] = logits.astype(o_ref.dtype)

    # Last vocab tile: normalize everything in place and write the final tile.
    @pl.when(j == num_v_tiles - 1)
    def _finalize():
        lse = m_scr[...] + jnp.log(l_scr[...])
        last = (num_v_tiles - 1) * tv
        if num_v_tiles > 1:
            o_ref[:, :last] = o_ref[:, :last] - lse
        o_ref[:, last:] = (logits - lse).astype(o_ref.dtype)


def masked_language_model(x, w_t, b, *, tm=256, tv=2048):
    """x: [B, S, H] float32, w_t: [H, V] (transposed nn.Linear weight), b: [V]."""
    B, S, H = x.shape
    V = w_t.shape[1]
    M = B * S

    # Row tile: MXU-aligned, clamped to the (8-aligned) problem size.
    tm = min(tm, _round_up(M, 8))
    m_pad = _round_up(M, tm)

    # Vocab tile: multiple of 128, clamped; pad V so it divides evenly.
    tv = min(tv, _round_up(V, 128))
    assert tv % 128 == 0
    v_pad = _round_up(V, tv)
    num_v_tiles = v_pad // tv

    # bf16 operands for the MXU; pad rows with zeros, padded vocab columns get
    # zero weights + a huge negative bias so they never affect the softmax.
    x2d = x.reshape(M, H).astype(jnp.bfloat16)
    if m_pad != M:
        x2d = jnp.pad(x2d, ((0, m_pad - M), (0, 0)))
    w_bf = w_t.astype(jnp.bfloat16)
    b2d = b.reshape(1, V).astype(jnp.float32)
    if v_pad != V:
        w_bf = jnp.pad(w_bf, ((0, 0), (0, v_pad - V)))
        b2d = jnp.pad(b2d, ((0, 0), (0, v_pad - V)),
                      constant_values=_NEG_BIG)

    kernel = functools.partial(mlm_kernel, tv=tv, num_v_tiles=num_v_tiles)

    out2d = pl.pallas_call(
        kernel,
        out_shape=jax.ShapeDtypeStruct((m_pad, v_pad), jnp.float32),
        grid_spec=pltpu.PrefetchScalarGridSpec(
            num_scalar_prefetch=0,
            grid=(m_pad // tm, num_v_tiles),
            in_specs=[
                # Row tile of activations, resident across the vocab loop.
                pl.BlockSpec((tm, H), lambda i, j: (i, 0)),
                # Streaming weight / bias tiles along the vocab axis.
                pl.BlockSpec((H, tv), lambda i, j: (0, j)),
                pl.BlockSpec((1, tv), lambda i, j: (0, j)),
            ],
            # Full-width output slab, resident across the vocab loop; raw
            # logits land here tile-by-tile and are normalized in place.
            out_specs=pl.BlockSpec((tm, v_pad), lambda i, j: (i, 0)),
            scratch_shapes=[
                pltpu.VMEM((tm, 1), jnp.float32),   # running max
                pltpu.VMEM((tm, 1), jnp.float32),   # running sum-exp
            ],
        ),
        compiler_params=pltpu.CompilerParams(
            dimension_semantics=("parallel", "arbitrary")),
    )(x2d, w_bf, b2d)

    return out2d[:M, :V].reshape(B, S, V)


def reference(x, w_t, b):
    logits = jnp.einsum("bsh,hv->bsv", x, w_t,
                        precision=jax.lax.Precision.HIGHEST) + b
    return jax.nn.log_softmax(logits, axis=-1)


def _run_case(key, batch, seq, hidden, vocab, **kw):
    k_x, k_w, k_b = jax.random.split(key, 3)
    x = jax.random.normal(k_x, (batch, seq, hidden), dtype=jnp.float32)
    # nn.Linear(hidden, vocab) weight is (vocab, hidden); store its transpose.
    w_t = (jax.random.normal(k_w, (hidden, vocab), dtype=jnp.float32)
           * (1.0 / jnp.sqrt(hidden)))
    b = jax.random.normal(k_b, (vocab,), dtype=jnp.float32) * 0.02

    out = jax.block_until_ready(masked_language_model(x, w_t, b, **kw))
    ref = reference(x, w_t, b)

    assert out.shape == (batch, seq, vocab)
    # probabilities sum to ~1 per row
    assert jnp.allclose(jnp.sum(jnp.exp(out), axis=-1), 1.0, atol=1e-3)
    # bf16 matmul operands -> modest tolerance vs the f32 reference
    max_err = jnp.max(jnp.abs(out - ref))
    assert max_err < 5e-2, max_err


if __name__ == "__main__":
    key = jax.random.PRNGKey(0)
    k1, k2 = jax.random.split(key)

    # Toy shape from the original module test (single vocab tile, no padding).
    _run_case(k1, batch=2, seq=8, hidden=32, vocab=512)

    # Awkward shape: exercises row padding, vocab padding (bias = -1e30) and
    # the multi-tile online log-softmax path (1000 -> 1024, 8 vocab tiles).
    _run_case(k2, batch=2, seq=7, hidden=32, vocab=1000, tv=128)

    print("KERNEL_OK")
</pallas_src>

<mosaic_0001>
module attributes {stable_mosaic.version = 11 : i64} {
  func.func @mlm_kernel(%arg0: i32, %arg1: i32, %arg2: memref<16x32xbf16, #tpu.memory_space<vmem>>, %arg3: memref<32x512xbf16, #tpu.memory_space<vmem>>, %arg4: memref<1x512xf32, #tpu.memory_space<vmem>>, %arg5: memref<16x512xf32, #tpu.memory_space<vmem>>, %arg6: memref<16x1xf32, #tpu.memory_space<vmem>>, %arg7: memref<16x1xf32, #tpu.memory_space<vmem>>) attributes {dimension_semantics = [#tpu.dimension_semantics<parallel>, #tpu.dimension_semantics<arbitrary>], iteration_bounds = array<i64: 1, 1>, scalar_prefetch = 0 : i64, scratch_operands = 2 : i64, tpu.core_type = #tpu.core_type<tc>, window_params = [{transform_indices = @transform_0, window_bounds = array<i64: 16, 32>}, {transform_indices = @transform_1, window_bounds = array<i64: 32, 512>}, {transform_indices = @transform_2, window_bounds = array<i64: 1, 512>}, {transform_indices = @transform_3, window_bounds = array<i64: 16, 512>}]} {
    %c0_i32 = arith.constant 0 : i32
    %0 = arith.cmpi eq, %arg1, %c0_i32 : i32
    %1 = arith.extui %0 : i1 to i32
    %c0_i32_0 = arith.constant 0 : i32
    %2 = arith.cmpi ne, %1, %c0_i32_0 : i32
    scf.if %2 {
      %cst_18 = arith.constant -1.000000e+30 : f32
      %28 = vector.broadcast %cst_18 : f32 to vector<16x1xf32>
      %c0_19 = arith.constant 0 : index
      %c0_20 = arith.constant 0 : index
      %29 = vector.load %arg6[%c0_19, %c0_20] : memref<16x1xf32, #tpu.memory_space<vmem>>, vector<16x1xf32>
      tpu.vector_store %arg6[%c0_19, %c0_20], %28 {strides = array<i32>} : memref<16x1xf32, #tpu.memory_space<vmem>>, vector<16x1xf32>,
      %cst_21 = arith.constant 0.000000e+00 : f32
      %30 = vector.broadcast %cst_21 : f32 to vector<16x1xf32>
      %c0_22 = arith.constant 0 : index
      %c0_23 = arith.constant 0 : index
      %31 = vector.load %arg7[%c0_22, %c0_23] : memref<16x1xf32, #tpu.memory_space<vmem>>, vector<16x1xf32>
      tpu.vector_store %arg7[%c0_22, %c0_23], %30 {strides = array<i32>} : memref<16x1xf32, #tpu.memory_space<vmem>>, vector<16x1xf32>,
    } else {
    }
    %c0 = arith.constant 0 : index
    %c0_1 = arith.constant 0 : index
    %3 = vector.load %arg2[%c0, %c0_1] : memref<16x32xbf16, #tpu.memory_space<vmem>>, vector<16x32xbf16>
    %c0_2 = arith.constant 0 : index
    %c0_3 = arith.constant 0 : index
    %4 = vector.load %arg3[%c0_2, %c0_3] : memref<32x512xbf16, #tpu.memory_space<vmem>>, vector<32x512xbf16>
    %cst = arith.constant dense<0.000000e+00> : vector<16x512xf32>
    %5 = tpu.matmul %3, %4, %cst {dimension_numbers = #tpu.dot_dimension_numbers<[1], [0], [0], [1], [0, 0, 1, 1], [], []>} : vector<16x32xbf16>, vector<32x512xbf16>, vector<16x512xf32> -> vector<16x512xf32>
    %c0_4 = arith.constant 0 : index
    %c0_5 = arith.constant 0 : index
    %6 = vector.load %arg4[%c0_4, %c0_5] : memref<1x512xf32, #tpu.memory_space<vmem>>, vector<1x512xf32>
    %7 = vector.broadcast %6 : vector<1x512xf32> to vector<16x512xf32>
    %8 = arith.addf %5, %7 : vector<16x512xf32>
    %c0_6 = arith.constant 0 : index
    %c0_7 = arith.constant 0 : index
    %9 = vector.load %arg6[%c0_6, %c0_7] : memref<16x1xf32, #tpu.memory_space<vmem>>, vector<16x1xf32>
    %cst_8 = arith.constant dense<0xFF800000> : vector<16xf32>
    %10 = vector.multi_reduction <maximumf>, %8, %cst_8 [1] : vector<16x512xf32> to vector<16xf32>
    %11 = vector.shape_cast %10 : vector<16xf32> to vector<16x1xf32>
    %12 = arith.maximumf %9, %11 : vector<16x1xf32>
    %13 = arith.subf %9, %12 : vector<16x1xf32>
    %14 = math.exp %13 : vector<16x1xf32>
    %c0_9 = arith.constant 0 : index
    %c0_10 = arith.constant 0 : index
    %15 = vector.load %arg7[%c0_9, %c0_10] : memref<16x1xf32, #tpu.memory_space<vmem>>, vector<16x1xf32>
    %16 = arith.mulf %14, %15 : vector<16x1xf32>
    %17 = vector.broadcast %12 : vector<16x1xf32> to vector<16x512xf32>
    %18 = arith.subf %8, %17 : vector<16x512xf32>
    %19 = math.exp %18 : vector<16x512xf32>
    %cst_11 = arith.constant dense<0.000000e+00> : vector<16xf32>
    %20 = vector.multi_reduction <add>, %19, %cst_11 [1] : vector<16x512xf32> to vector<16xf32>
    %21 = vector.shape_cast %20 : vector<16xf32> to vector<16x1xf32>
    %22 = arith.addf %16, %21 : vector<16x1xf32>
    %c0_12 = arith.constant 0 : index
    %c0_13 = arith.constant 0 : index
    %23 = vector.load %arg7[%c0_12, %c0_13] : memref<16x1xf32, #tpu.memory_space<vmem>>, vector<16x1xf32>
    tpu.vector_store %arg7[%c0_12, %c0_13], %22 {strides = array<i32>} : memref<16x1xf32, #tpu.memory_space<vmem>>, vector<16x1xf32>,
    %c0_14 = arith.constant 0 : index
    %c0_15 = arith.constant 0 : index
    %24 = vector.load %arg6[%c0_14, %c0_15] : memref<16x1xf32, #tpu.memory_space<vmem>>, vector<16x1xf32>
    tpu.vector_store %arg6[%c0_14, %c0_15], %12 {strides = array<i32>} : memref<16x1xf32, #tpu.memory_space<vmem>>, vector<16x1xf32>,
    %c0_i32_16 = arith.constant 0 : i32
    %25 = arith.cmpi eq, %arg1, %c0_i32_16 : i32
    %26 = arith.extui %25 : i1 to i32
    %c0_i32_17 = arith.constant 0 : i32
    %27 = arith.cmpi ne, %26, %c0_i32_17 : i32
    scf.if %27 {
      %c0_18 = arith.constant 0 : index
      %c0_19 = arith.constant 0 : index
      %28 = vector.load %arg6[%c0_18, %c0_19] : memref<16x1xf32, #tpu.memory_space<vmem>>, vector<16x1xf32>
      %c0_20 = arith.constant 0 : index
      %c0_21 = arith.constant 0 : index
      %29 = vector.load %arg7[%c0_20, %c0_21] : memref<16x1xf32, #tpu.memory_space<vmem>>, vector<16x1xf32>
      %30 = math.log %29 : vector<16x1xf32>
      %31 = arith.addf %28, %30 : vector<16x1xf32>
      %32 = vector.broadcast %31 : vector<16x1xf32> to vector<16x512xf32>
      %33 = arith.subf %8, %32 : vector<16x512xf32>
      %c0_22 = arith.constant 0 : index
      %c0_23 = arith.constant 0 : index
      %34 = vector.load %arg5[%c0_22, %c0_23] : memref<16x512xf32, #tpu.memory_space<vmem>>, vector<16x512xf32>
      tpu.vector_store %arg5[%c0_22, %c0_23], %33 {strides = array<i32>} : memref<16x512xf32, #tpu.memory_space<vmem>>, vector<16x512xf32>,
    } else {
    }
    return
  }
  func.func @transform_0(%arg0: i32, %arg1: i32) -> (i32, i32) {
    %c0_i32 = arith.constant 0 : i32
    %c0_i32_0 = arith.constant 0 : i32
    return %arg0, %c0_i32 : i32, i32
  }
  func.func @transform_1(%arg0: i32, %arg1: i32) -> (i32, i32) {
    %c0_i32 = arith.constant 0 : i32
    %c0_i32_0 = arith.constant 0 : i32
    return %c0_i32, %arg1 : i32, i32
  }
  func.func @transform_2(%arg0: i32, %arg1: i32) -> (i32, i32) {
    %c0_i32 = arith.constant 0 : i32
    %c0_i32_0 = arith.constant 0 : i32
    return %c0_i32, %arg1 : i32, i32
  }
  func.func @transform_3(%arg0: i32, %arg1: i32) -> (i32, i32) {
    %c0_i32 = arith.constant 0 : i32
    %c0_i32_0 = arith.constant 0 : i32
    return %arg0, %c0_i32 : i32, i32
  }
}

</mosaic_0001>

<llo_original>
// kernel: tpu_custom_call.1
$region0: #{tpu_custom_call.1}
  #allocation0 [shape = 'u32[]', space=smem, size = 0x4, offset = 0x4, fixed_abs, tag = 'smem constant byte address 0x4 - core index']
  #allocation1 [shape = 'u32[144,128]{1,0:T(1,128)}', space=vmem, size = 0x12000, scoped, tag = 'internal scratch']
  #allocation2 [shape = 'f32[16,1]{1,0:T(8,128)}', space=vmem, size = 0x2000, scoped, tag = 'scratch operand']
  #allocation3 [shape = 'f32[16,1]{1,0:T(8,128)}', space=vmem, size = 0x2000, scoped, tag = 'scratch operand']
  %s0 = inlined_call_operand.hbm [shape: bf16[16,32], index: 0, kind: input, shape index: {}]
  %s1 = inlined_call_operand.hbm [shape: bf16[32,512], index: 1, kind: input, shape index: {}]
  %s2 = inlined_call_operand.vmem [shape: f32[1,512], index: 2, kind: input, shape index: {}]
  %s3 = inlined_call_operand.hbm [shape: f32[16,512], index: 3, kind: output, shape index: {}]
  %s4 = sld [smem:[#allocation0]]
  $region38: #{tpu_custom_call.1} parent=0
    _
  %s6 = ssub.s32 1, %s4
  %s7 = scalar_select 0, %s6, %s4
  $region1: #{tpu_custom_call.1} parent=0
    #allocation4 [shape = 'u8[4096]{0}', space=vmem, size = 0x1000, scoped, tag = 'input window, operand 0, single buffered']
    #allocation5 [shape = 's32[1]{0}', space=sflag, size = 0x4, scoped, tag = 'scoped memory for tpu_custom_call.1']
    #allocation6 [shape = 's32[1]{0}', space=sflag, size = 0x4, scoped, tag = 'scoped memory for tpu_custom_call.1']
    #allocation7 [shape = 'u8[32768]{0}', space=vmem, size = 0x8000, scoped, tag = 'input window, operand 1, single buffered']
    #allocation8 [shape = 's32[1]{0}', space=sflag, size = 0x4, scoped, tag = 'scoped memory for tpu_custom_call.1']
    #allocation9 [shape = 'u8[32768]{0}', space=vmem, size = 0x8000, scoped, tag = 'output window, operand 0, single buffered']
    %8 = vsyncpa [#allocation5], 0
    %9 = vsyncpa [#allocation8], 0
    %10 = vsyncpa [#allocation6], 0
    // Predicated region
    $region2: #{tpu_custom_call.1} parent=1 // pred_check
      _
    $region3: #{tpu_custom_call.1} parent=1 // pred_check_branch
      %12 = sbr.rel (0) target = $region5
    $region4: #{tpu_custom_call.1} parent=1 // pred_region
      %s14 = ssub.s32 128, 128
      %15 = vsyncadd [#allocation5], %s14
      %s16 = sshll.u32 [#allocation4], 4
      %s17 = int_to_ptr.vmem [resolvable:$true] %s16
      %22 = dma.hbm_to_vmem [thread:$0]  %s0, 128, %s17, [#allocation5], 64, 64, 4
    $region5: #{tpu_custom_call.1} parent=1 // pred_fallthru
      _
    // Predicated region
    $region6: #{tpu_custom_call.1} parent=1 // pred_check
      _
    $region7: #{tpu_custom_call.1} parent=1 // pred_check_branch
      %24 = sbr.rel (0) target = $region9
    $region8: #{tpu_custom_call.1} parent=1 // pred_region
      %s26 = ssub.s32 1024, 1024
      %27 = vsyncadd [#allocation8], %s26
      %s28 = sshll.u32 [#allocation7], 4
      %s29 = int_to_ptr.vmem [resolvable:$true] %s28
      %34 = dma.hbm_to_vmem [thread:$0]  %s1, 1024, %s29, [#allocation8], 256, 256, 16
    $region9: #{tpu_custom_call.1} parent=1 // pred_fallthru
      _
    // Predicated region
    $region10: #{tpu_custom_call.1} parent=1 // pred_check
      _
    $region11: #{tpu_custom_call.1} parent=1 // pred_check_branch
      %36 = sbr.rel (0) target = $region13
    $region12: #{tpu_custom_call.1} parent=1 // pred_region
      _
    $region13: #{tpu_custom_call.1} parent=1 // pred_fallthru
      _
    // Predicated region
    $region14: #{tpu_custom_call.1} parent=1 // pred_check
      _
    $region15: #{tpu_custom_call.1} parent=1 // pred_check_branch
      %38 = sbr.rel (0) target = $region17
    $region16: #{tpu_custom_call.1} parent=1 // pred_region
      %39 = dma.done [#allocation5], 128
    $region17: #{tpu_custom_call.1} parent=1 // pred_fallthru
      _
    // Predicated region
    $region18: #{tpu_custom_call.1} parent=1 // pred_check
      _
    $region19: #{tpu_custom_call.1} parent=1 // pred_check_branch
      %41 = sbr.rel (0) target = $region21
    $region20: #{tpu_custom_call.1} parent=1 // pred_region
      %42 = dma.done [#allocation8], 1024
    $region21: #{tpu_custom_call.1} parent=1 // pred_fallthru
      _
    %p44 = scmp.eq.s32.totalorder 0, 0
    // Predicated region
    $region22: #{tpu_custom_call.1} parent=1 // pred_check
      %p45 = pneg %p44
    $region23: #{tpu_custom_call.1} parent=1 // pred_check_branch
      %47 = sbr.rel (%p45) target = $region25
    $region24: #{tpu_custom_call.1} parent=1 // pred_region
      %vm48 = vcmask 7168
      %49 = vst.msk [vmem:[#allocation2] sm:$0xff] %vm48, -1e+30
      %50 = vst.msk [vmem:[#allocation2 + $0x8] sm:$0xff] %vm48, -1e+30
      %51 = vst.msk [vmem:[#allocation3] sm:$0xff] %vm48, 0.0
      %52 = vst.msk [vmem:[#allocation3 + $0x8] sm:$0xff] %vm48, 0.0
    $region25: #{tpu_custom_call.1} parent=1 // pred_fallthru
      _
    %v53 = vld [vmem:[#allocation4] sm:$0xf]
    %v54 = vld [vmem:[#allocation4 + $0x4] sm:$0xf]
    %v55 = vld [vmem:[#allocation7] sm:$0xff]
    %v56 = vld [vmem:[#allocation7 + $0x8] sm:$0xff]
    %v57 = vld [vmem:[#allocation7 + $0x10] sm:$0xff]
    %v58 = vld [vmem:[#allocation7 + $0x18] sm:$0xff]
    %v59 = vld [vmem:[#allocation7 + $0x20] sm:$0xff]
    %v60 = vld [vmem:[#allocation7 + $0x28] sm:$0xff]
    %v61 = vld [vmem:[#allocation7 + $0x30] sm:$0xff]
    %v62 = vld [vmem:[#allocation7 + $0x38] sm:$0xff]
    %v63 = vld [vmem:[%s2] sm:$0xf]
    %v65 = vlaneseq
    %v66 = vshrl.u32 %v65, 7
    %v67 = vsub.s32 0, %v66
    %v68 = vrot.slane %v63, %v67
    %v69 = vlaneseq
    %v70 = vshrl.u32 %v69, 7
    %v71 = vsub.s32 1, %v70
    %v72 = vrot.slane %v63, %v71
    %v73 = vlaneseq
    %v74 = vshrl.u32 %v73, 7
    %v75 = vsub.s32 2, %v74
    %v76 = vrot.slane %v63, %v75
    %v77 = vlaneseq
    %v78 = vshrl.u32 %v77, 7
    %v79 = vsub.s32 3, %v78
    %v80 = vrot.slane %v63, %v79
    %v87 = vunpack.c.l.b16 %v53
    %v88 = vunpack.c.l.b16 %v54
    %v89 = vpack.c.b16 %v88, %v87
    %v98 = vunpack.c.l.b16 %v55
    %v99 = vunpack.c.h.b16 %v55
    %v100 = vunpack.c.l.b16 %v56
    %v101 = vunpack.c.h.b16 %v56
    %v102 = vunpack.c.l.b16 %v57
    %v103 = vunpack.c.h.b16 %v57
    %v104 = vunpack.c.l.b16 %v58
    %v105 = vunpack.c.h.b16 %v58
    %v106 = vunpack.c.l.b16 %v59
    %v107 = vunpack.c.h.b16 %v59
    %v108 = vunpack.c.l.b16 %v60
    %v109 = vunpack.c.h.b16 %v60
    %v110 = vunpack.c.l.b16 %v61
    %v111 = vunpack.c.h.b16 %v61
    %v112 = vunpack.c.l.b16 %v62
    %v113 = vunpack.c.h.b16 %v62
    %v114 = vpack.c.b16 %v102, %v98
    %v115 = vpack.c.b16 %v103, %v99
    %v116 = vpack.c.b16 %v104, %v100
    %v117 = vpack.c.b16 %v105, %v101
    %v118 = vpack.c.b16 %v110, %v106
    %v119 = vpack.c.b16 %v111, %v107
    %v120 = vpack.c.b16 %v112, %v108
    %v121 = vpack.c.b16 %v113, %v109
    %vm130 = vcmask 261120
    %v132 = vsel %vm130, %v89, 0
    %134 = vmatprep.subr.bf16.mxu0 %v115
    %135 = vmatpush1.bf16.msra.mxu0 %v114
    %136 = vmatprep.subr.bf16.mxu0 %v119
    %137 = vmatpush1.bf16.msra.mxu0 %v118
    %138 = vmatprep.subr.bf16.mxu0 0
    %139 = vmatpush1.bf16.msra.mxu0 0
    %140 = vmatprep.subr.bf16.mxu0 0
    %141 = vmatpush1.bf16.msra.mxu0 0
    %142 = vmatprep.subr.bf16.mxu0 0
    %143 = vmatpush1.bf16.msra.mxu0 0
    %144 = vmatprep.subr.bf16.mxu0 0
    %145 = vmatpush1.bf16.msra.mxu0 0
    %146 = vmatprep.subr.bf16.mxu0 0
    %147 = vmatpush1.bf16.msra.mxu0 0
    %148 = vmatprep.subr.bf16.mxu0 0
    %149 = vmatpush1.bf16.msra.mxu0 0
    %150 = vmatprep.subr.bf16.mxu0 0
    %151 = vmatpush1.bf16.msra.mxu0 0
    %152 = vmatprep.subr.bf16.mxu0 0
    %153 = vmatpush1.bf16.msra.mxu0 0
    %154 = vmatprep.subr.bf16.mxu0 0
    %155 = vmatpush1.bf16.msra.mxu0 0
    %156 = vmatprep.subr.bf16.mxu0 0
    %157 = vmatpush1.bf16.msra.mxu0 0
    %158 = vmatprep.subr.bf16.mxu0 0
    %159 = vmatpush1.bf16.msra.mxu0 0
    %160 = vmatprep.subr.bf16.mxu0 0
    %161 = vmatpush1.bf16.msra.mxu0 0
    %162 = vmatprep.subr.bf16.mxu0 0
    %163 = vmatpush1.bf16.msra.mxu0 0
    %164 = vmatprep.subr.bf16.mxu0 0
    %165 = vmatpush1.bf16.msra.mxu0 0
    %166 = vmatprep.mubr.bf16.mxu0 0
    %167 = vmatmul.mubr.bf16.gmra.mrb[0].mxu0 %v132
    %v168 = vpop.f32.mrb[0].mxu0
    %v169 = vadd.f32 %v68, %v168
    %v170 = vpop.f32.mrb[0].mxu0
    %v171 = vadd.f32 %v72, %v170
    %v172 = vpop.f32.mrb[0].mxu0
    %v173 = vadd.f32 %v68, %v172
    %v174 = vpop.f32.mrb[0].mxu0
    %v175 = vadd.f32 %v72, %v174
    %176 = vdwg.mxu0
    %177 = vmatprep.subr.bf16.mxu0 %v117
    %178 = vmatpush1.bf16.msra.mxu0 %v116
    %179 = vmatprep.subr.bf16.mxu0 %v121
    %180 = vmatpush1.bf16.msra.mxu0 %v120
    %181 = vmatprep.subr.bf16.mxu0 0
    %182 = vmatpush1.bf16.msra.mxu0 0
    %183 = vmatprep.subr.bf16.mxu0 0
    %184 = vmatpush1.bf16.msra.mxu0 0
    %185 = vmatprep.subr.bf16.mxu0 0
    %186 = vmatpush1.bf16.msra.mxu0 0
    %187 = vmatprep.subr.bf16.mxu0 0
    %188 = vmatpush1.bf16.msra.mxu0 0
    %189 = vmatprep.subr.bf16.mxu0 0
    %190 = vmatpush1.bf16.msra.mxu0 0
    %191 = vmatprep.subr.bf16.mxu0 0
    %192 = vmatpush1.bf16.msra.mxu0 0
    %193 = vmatprep.subr.bf16.mxu0 0
    %194 = vmatpush1.bf16.msra.mxu0 0
    %195 = vmatprep.subr.bf16.mxu0 0
    %196 = vmatpush1.bf16.msra.mxu0 0
    %197 = vmatprep.subr.bf16.mxu0 0
    %198 = vmatpush1.bf16.msra.mxu0 0
    %199 = vmatprep.subr.bf16.mxu0 0
    %200 = vmatpush1.bf16.msra.mxu0 0
    %201 = vmatprep.subr.bf16.mxu0 0
    %202 = vmatpush1.bf16.msra.mxu0 0
    %203 = vmatprep.subr.bf16.mxu0 0
    %204 = vmatpush1.bf16.msra.mxu0 0
    %205 = vmatprep.subr.bf16.mxu0 0
    %206 = vmatpush1.bf16.msra.mxu0 0
    %207 = vmatprep.subr.bf16.mxu0 0
    %208 = vmatpush1.bf16.msra.mxu0 0
    %209 = vmatprep.mubr.bf16.mxu0 0
    %210 = vmatmul.mubr.bf16.gmra.mrb[0].mxu0 %v132
    %v211 = vpop.f32.mrb[0].mxu0
    %v212 = vadd.f32 %v76, %v211
    %v213 = vpop.f32.mrb[0].mxu0
    %v214 = vadd.f32 %v80, %v213
    %v215 = vpop.f32.mrb[0].mxu0
    %v216 = vadd.f32 %v76, %v215
    %v217 = vpop.f32.mrb[0].mxu0
    %v218 = vadd.f32 %v80, %v217
    %219 = vdwg.mxu0
    %v220 = vld [vmem:[#allocation2] sm:$0xff]
    %v221 = vld [vmem:[#allocation2 + $0x8] sm:$0xff]
    %v222 = vmax.f32 %v169, %v212
    %v223 = vmax.f32 %v171, %v214
    %v224 = vmax.f32 %v222, %v223
    %225 = vmax.xlane.f32.xlu0 %v224
    %v226 = vpop.xlane.xlu0 %225
    %v227 = vmax.f32 %v173, %v216
    %v228 = vmax.f32 %v175, %v218
    %v229 = vmax.f32 %v227, %v228
    %230 = vmax.xlane.f32.xlu0 %v229
    %v231 = vpop.xlane.xlu0 %230
    %v232 = vmax.f32 %v220, %v226
    %v233 = vmax.f32 %v221, %v231
    %v234 = vsub.f32 %v220, %v232
    %v235 = vsub.f32 %v221, %v233
    %v236 = vmul.f32 %v234, 1.442695
    %v237 = vpow.pop %v236
    %v238 = vmul.f32 %v235, 1.442695
    %v239 = vpow.pop %v238
    %v240 = vld [vmem:[#allocation3] sm:$0xff]
    %v241 = vld [vmem:[#allocation3 + $0x8] sm:$0xff]
    %v242 = vmul.f32 %v237, %v240
    %v243 = vmul.f32 %v239, %v241
    %245 = vset.pattern.permute.xlu0 0
    %246 = vperm.xlu0 %245, %v232
    %v247 = vpop.permute.xlu0 %246
    %250 = vset.pattern.permute.xlu0 0
    %251 = vperm.xlu0 %250, %v233
    %v252 = vpop.permute.xlu0 %251
    %v254 = vsub.f32 %v169, %v247
    %v255 = vsub.f32 %v171, %v247
    %v256 = vsub.f32 %v212, %v247
    %v257 = vsub.f32 %v214, %v247
    %v258 = vsub.f32 %v173, %v252
    %v259 = vsub.f32 %v175, %v252
    %v260 = vsub.f32 %v216, %v252
    %v261 = vsub.f32 %v218, %v252
    %v262 = vmul.f32 %v254, 1.442695
    %v263 = vpow.pop %v262
    %v264 = vmul.f32 %v255, 1.442695
    %v265 = vpow.pop %v264
    %v266 = vmul.f32 %v256, 1.442695
    %v267 = vpow.pop %v266
    %v268 = vmul.f32 %v257, 1.442695
    %v269 = vpow.pop %v268
    %v270 = vmul.f32 %v258, 1.442695
    %v271 = vpow.pop %v270
    %v272 = vmul.f32 %v259, 1.442695
    %v273 = vpow.pop %v272
    %v274 = vmul.f32 %v260, 1.442695
    %v275 = vpow.pop %v274
    %v276 = vmul.f32 %v261, 1.442695
    %v277 = vpow.pop %v276
    %v278 = vadd.f32 %v263, %v265
    %v279 = vadd.f32 %v278, %v267
    %v280 = vadd.f32 %v279, %v269
    %281 = vadd.xlane.f32.xlu0 %v280
    %v282 = vpop.xlane.xlu0 %281
    %v283 = vadd.f32 %v271, %v273
    %v284 = vadd.f32 %v283, %v275
    %v285 = vadd.f32 %v284, %v277
    %286 = vadd.xlane.f32.xlu0 %v285
    %v287 = vpop.xlane.xlu0 %286
    %v288 = vadd.f32 %v242, %v282
    %v289 = vadd.f32 %v243, %v287
    %vm290 = vcmask 7168
    %291 = vst.msk [vmem:[#allocation3] sm:$0xff] %vm290, %v288
    %292 = vst.msk [vmem:[#allocation3 + $0x8] sm:$0xff] %vm290, %v289
    %293 = vst.msk [vmem:[#allocation2] sm:$0xff] %vm290, %v232
    %294 = vst.msk [vmem:[#allocation2 + $0x8] sm:$0xff] %vm290, %v233
    // Predicated region
    $region26: #{tpu_custom_call.1} parent=1 // pred_check
      %p295 = pneg %p44
    $region27: #{tpu_custom_call.1} parent=1 // pred_check_branch
      %297 = sbr.rel (%p295) target = $region29
    $region28: #{tpu_custom_call.1} parent=1 // pred_region
      %v298 = vld [vmem:[#allocation2] sm:$0xff]
      %v299 = vld [vmem:[#allocation2 + $0x8] sm:$0xff]
      %v300 = vld [vmem:[#allocation3] sm:$0xff]
      %v301 = vld [vmem:[#allocation3 + $0x8] sm:$0xff]
      %v302 = vlog2.pop %v300
      %v303 = vmul.f32 %v302, 0.6931472
      %v304 = vlog2.pop %v301
      %v305 = vmul.f32 %v304, 0.6931472
      %v306 = vadd.f32 %v298, %v303
      %v307 = vadd.f32 %v299, %v305
      %309 = vset.pattern.permute.xlu0 0
      %310 = vperm.xlu0 %309, %v306
      %v311 = vpop.permute.xlu0 %310
      %314 = vset.pattern.permute.xlu0 0
      %315 = vperm.xlu0 %314, %v307
      %v316 = vpop.permute.xlu0 %315
      %v318 = vsub.f32 %v169, %v311
      %v319 = vsub.f32 %v171, %v311
      %v320 = vsub.f32 %v212, %v311
      %v321 = vsub.f32 %v214, %v311
      %v322 = vsub.f32 %v173, %v316
      %v323 = vsub.f32 %v175, %v316
      %v324 = vsub.f32 %v216, %v316
      %v325 = vsub.f32 %v218, %v316
      %326 = vst [vmem:[#allocation9] sm:$0xff] %v318
      %327 = vst [vmem:[#allocation9 + $0x8] sm:$0xff] %v319
      %328 = vst [vmem:[#allocation9 + $0x10] sm:$0xff] %v320
      %329 = vst [vmem:[#allocation9 + $0x18] sm:$0xff] %v321
      %330 = vst [vmem:[#allocation9 + $0x20] sm:$0xff] %v322
      %331 = vst [vmem:[#allocation9 + $0x28] sm:$0xff] %v323
      %332 = vst [vmem:[#allocation9 + $0x30] sm:$0xff] %v324
      %333 = vst [vmem:[#allocation9 + $0x38] sm:$0xff] %v325
    $region29: #{tpu_custom_call.1} parent=1 // pred_fallthru
      _
    // Predicated region
    $region30: #{tpu_custom_call.1} parent=1 // pred_check
      _
    $region31: #{tpu_custom_call.1} parent=1 // pred_check_branch
      %335 = sbr.rel (0) target = $region33
    $region32: #{tpu_custom_call.1} parent=1 // pred_region
      %s337 = ssub.s32 1024, 1024
      %338 = vsyncadd [#allocation6], %s337
      %s339 = sshll.u32 [#allocation9], 4
      %s340 = int_to_ptr.vmem [resolvable:$true] %s339
      %345 = dma.vmem_to_hbm [thread:$0]  %s340, 1024, %s3, [#allocation6], 512, 512, 32
    $region33: #{tpu_custom_call.1} parent=1 // pred_fallthru
      _
    // Predicated region
    $region34: #{tpu_custom_call.1} parent=1 // pred_check
      _
    $region35: #{tpu_custom_call.1} parent=1 // pred_check_branch
      %347 = sbr.rel (0) target = $region37
    $region36: #{tpu_custom_call.1} parent=1 // pred_region
      %348 = dma.done [#allocation6], 1024
    $region37: #{tpu_custom_call.1} parent=1 // pred_fallthru
      _
    %349 = vsyncpa [#allocation5], 1
    %350 = vsyncpa [#allocation8], 1
    %351 = vsyncpa [#allocation6], 1

</llo_original>
